<compile_context>
chip_gen: v6e
topology: v6e:2x2x1
jax: 0.10.0
libtpu: 0.0.40
codegen_flags: <defaults>
</compile_context>

<pallas_src>
import jax
import jax.numpy as jnp
from jax.experimental import pallas as pl
from jax.experimental.pallas import tpu as pltpu


# ---------------------------------------------------------------------------
# Fused FFN kernel: y = relu(x @ W1 + b1) @ W2 + b2   (d_inner tiled over k)
# ---------------------------------------------------------------------------

def _ffn_kernel(x_ref, w1_ref, b1_ref, w2_ref, b2_ref, o_ref, acc_ref):
    # x_ref:  (tm, d_model) f32      w1_ref: (d_model, tk) bf16   b1_ref: (1, tk) f32
    # w2_ref: (tk, d_model) bf16     b2_ref: (1, d_model) f32
    # o_ref:  (tm, d_model)          acc_ref: (tm, d_model) f32 scratch
    k = pl.program_id(1)

    @pl.when(k == 0)
    def _init():
        acc_ref[...] = jnp.zeros_like(acc_ref)

    x = x_ref[...].astype(jnp.bfloat16)                      # MXU input in bf16
    h = jnp.dot(x, w1_ref[...], preferred_element_type=jnp.float32)
    h = jnp.maximum(h + b1_ref[...], 0.0)                    # f32 elementwise
    # (dropout == identity in eval mode)
    acc_ref[...] += jnp.dot(h.astype(jnp.bfloat16), w2_ref[...],
                            preferred_element_type=jnp.float32)

    @pl.when(k == pl.num_programs(1) - 1)
    def _finalize():
        o_ref[...] = (acc_ref[...] + b2_ref[...]).astype(o_ref.dtype)


# ---------------------------------------------------------------------------
# Tiling helpers
# ---------------------------------------------------------------------------

def _round_up(v, m):
    return ((v + m - 1) // m) * m


def _choose_row_tile(n, tm_max):
    """Row tile (multiple of 8): aim for >=2 grid steps, keep padding waste low."""
    n8 = _round_up(n, 8)
    if n8 <= 8:
        return n8, n8
    tm = min(_round_up(tm_max, 8), max(8, (n8 // 2) // 8 * 8))
    # Shrink while the padded tail wastes more than half a tile AND more than
    # ~12.5% of the real rows (don't over-shrink into tiny tiles).
    while (tm > 8
           and 2 * (_round_up(n8, tm) - n8) > tm
           and (_round_up(n8, tm) - n8) > n8 // 8):
        tm = _round_up(tm // 2, 8)
    return tm, _round_up(n8, tm)


def _choose_inner_tile(d_inner, tk_max):
    """Largest multiple-of-128 divisor of d_inner <= tk_max (bounds W1/W2 blocks
    and the h intermediate for v7x's 64 MiB VMEM)."""
    if d_inner <= tk_max or d_inner % 128 != 0:
        return d_inner
    cap = (tk_max // 128) * 128
    for tk in range(cap, 0, -128):
        if d_inner % tk == 0:
            return tk
    return d_inner


# ---------------------------------------------------------------------------
# Wrapper
# ---------------------------------------------------------------------------

def feed_forward_pallas(x, w1, b1, w2, b2, *, tm_max=256, tk_max=2048):
    """Fused relu(x @ w1 + b1) @ w2 + b2.  x: (..., d_model)."""
    orig_shape = x.shape
    d_model = x.shape[-1]
    d_inner = w1.shape[1]

    x2d = x.reshape(-1, d_model)
    n = x2d.shape[0]

    tm, n_pad = _choose_row_tile(n, tm_max)
    if n_pad != n:
        x2d = jnp.pad(x2d, ((0, n_pad - n), (0, 0)))

    tk = _choose_inner_tile(d_inner, tk_max)
    grid = (n_pad // tm, d_inner // tk)

    # Weights feed the MXU in bf16; biases stay f32 for the VPU epilogue.
    w1_bf = w1.astype(jnp.bfloat16)
    w2_bf = w2.astype(jnp.bfloat16)
    b1_f32 = b1.astype(jnp.float32).reshape(1, d_inner)
    b2_f32 = b2.astype(jnp.float32).reshape(1, d_model)

    in_bytes = x2d.dtype.itemsize
    out_bytes = jnp.dtype(x.dtype).itemsize
    bf16_b, f32_b = 2, 4

    # Explicit VMEM budget: double-buffered I/O tiles + (default double-buffered)
    # weight/bias blocks + accumulator scratch + staged h intermediate, +50%.
    footprint = (
        2 * tm * d_model * in_bytes                    # x tiles
        + 2 * tm * d_model * out_bytes                 # out tiles
        + 2 * (d_model * tk + tk * d_model) * bf16_b   # W1/W2 blocks
        + 2 * (tk + d_model) * f32_b                   # b1/b2 blocks
        + tm * d_model * f32_b                         # accumulator scratch
        + tm * tk * f32_b                              # h intermediate
    )
    vmem_limit = int(min(128 * 1024 * 1024,
                         max(32 * 1024 * 1024, footprint * 3 // 2)))

    cost = pl.CostEstimate(
        flops=4 * n_pad * d_model * d_inner,
        transcendentals=0,
        bytes_accessed=(n_pad * d_model * in_bytes
                        + n_pad * d_model * out_bytes
                        + (w1_bf.size + w2_bf.size) * bf16_b
                        + (b1_f32.size + b2_f32.size) * f32_b),
    )

    out = pl.pallas_call(
        _ffn_kernel,
        out_shape=jax.ShapeDtypeStruct((n_pad, d_model), x.dtype),
        grid_spec=pltpu.PrefetchScalarGridSpec(
            num_scalar_prefetch=0,
            grid=grid,
            in_specs=[
                pl.BlockSpec((tm, d_model), lambda i, k: (i, 0)),   # x tile
                pl.BlockSpec((d_model, tk), lambda i, k: (0, k)),   # W1 block
                pl.BlockSpec((1, tk), lambda i, k: (0, k)),         # b1 block
                pl.BlockSpec((tk, d_model), lambda i, k: (k, 0)),   # W2 block
                pl.BlockSpec((1, d_model), lambda i, k: (0, 0)),    # b2
            ],
            out_specs=pl.BlockSpec((tm, d_model), lambda i, k: (i, 0)),
            scratch_shapes=[pltpu.VMEM((tm, d_model), jnp.float32)],
        ),
        compiler_params=pltpu.CompilerParams(
            dimension_semantics=("parallel", "arbitrary"),
            vmem_limit_bytes=vmem_limit,
        ),
        cost_estimate=cost,
    )(x2d, w1_bf, b1_f32, w2_bf, b2_f32)

    if n_pad != n:
        out = out[:n]
    return out.reshape(orig_shape)


# ---------------------------------------------------------------------------
# Parameter init (PyTorch nn.Linear default: U(-1/sqrt(fan_in), +1/sqrt(fan_in)))
# ---------------------------------------------------------------------------

def init_linear(key, d_in, d_out, dtype=jnp.float32):
    kw, kb = jax.random.split(key)
    bound = 1.0 / float(d_in) ** 0.5
    w = jax.random.uniform(kw, (d_in, d_out), dtype, -bound, bound)
    b = jax.random.uniform(kb, (1, d_out), dtype, -bound, bound)
    return w, b


def init_ffn_params(key, d_model, d_inner, dtype=jnp.float32):
    k1, k2 = jax.random.split(key)
    w1, b1 = init_linear(k1, d_model, d_inner, dtype)
    w2, b2 = init_linear(k2, d_inner, d_model, dtype)
    return {"W1": w1, "b1": b1, "W2": w2, "b2": b2}


def feed_forward_forward(params, x):
    return feed_forward_pallas(x, params["W1"], params["b1"],
                               params["W2"], params["b2"])


# ---------------------------------------------------------------------------
# Reference (plain f32 JAX) for correctness check
# ---------------------------------------------------------------------------

def feed_forward_ref(params, x):
    h = jnp.maximum(x @ params["W1"] + params["b1"], 0.0)
    return h @ params["W2"] + params["b2"]


# ---------------------------------------------------------------------------
# Main
# ---------------------------------------------------------------------------

if __name__ == "__main__":
    d_model, d_inner = 128, 512
    batch, seq = 4, 64

    key = jax.random.PRNGKey(0)
    k_params, k_x = jax.random.split(key)

    params = init_ffn_params(k_params, d_model, d_inner)
    x = jax.random.normal(k_x, (batch, seq, d_model), jnp.float32)

    fwd = jax.jit(feed_forward_forward)
    out = fwd(params, x)
    jax.block_until_ready(out)

    assert out.shape == (batch, seq, d_model)
    assert out.dtype == x.dtype

    ref = feed_forward_ref(params, x)
    max_err = float(jnp.max(jnp.abs(out - ref)))
    # bf16 MXU inputs / f32 accumulation -> looser tolerance vs the f32 reference.
    assert jnp.allclose(out, ref, atol=5e-2, rtol=5e-2), (
        f"mismatch vs reference (max abs err {max_err})")

    print("KERNEL_OK")
</pallas_src>

<mosaic_0001>
module attributes {stable_mosaic.version = 11 : i64} {
  func.func @_ffn_kernel(%arg0: i32, %arg1: i32, %arg2: memref<128x128xf32, #tpu.memory_space<vmem>>, %arg3: memref<128x512xbf16, #tpu.memory_space<vmem>>, %arg4: memref<1x512xf32, #tpu.memory_space<vmem>>, %arg5: memref<512x128xbf16, #tpu.memory_space<vmem>>, %arg6: memref<1x128xf32, #tpu.memory_space<vmem>>, %arg7: memref<128x128xf32, #tpu.memory_space<vmem>>, %arg8: memref<128x128xf32, #tpu.memory_space<vmem>>) attributes {dimension_semantics = [#tpu.dimension_semantics<parallel>, #tpu.dimension_semantics<arbitrary>], iteration_bounds = array<i64: 2, 1>, scalar_prefetch = 0 : i64, scratch_operands = 1 : i64, tpu.core_type = #tpu.core_type<tc>, window_params = [{transform_indices = @transform_0, window_bounds = array<i64: 128, 128>}, {transform_indices = @transform_1, window_bounds = array<i64: 128, 512>}, {transform_indices = @transform_2, window_bounds = array<i64: 1, 512>}, {transform_indices = @transform_3, window_bounds = array<i64: 512, 128>}, {pipeline_mode = #tpu.pipeline_mode<synchronous>, transform_indices = @transform_4, window_bounds = array<i64: 1, 128>}, {transform_indices = @transform_5, window_bounds = array<i64: 128, 128>}]} {
    %c0_i32 = arith.constant 0 : i32
    %0 = arith.cmpi eq, %arg1, %c0_i32 : i32
    %1 = arith.extui %0 : i1 to i32
    %c0_i32_0 = arith.constant 0 : i32
    %2 = arith.cmpi ne, %1, %c0_i32_0 : i32
    scf.if %2 {
      %cst_16 = arith.constant 0.000000e+00 : f32
      %21 = vector.broadcast %cst_16 : f32 to vector<128x128xf32>
      %c0_17 = arith.constant 0 : index
      %c0_18 = arith.constant 0 : index
      %22 = vector.load %arg8[%c0_17, %c0_18] : memref<128x128xf32, #tpu.memory_space<vmem>>, vector<128x128xf32>
      tpu.vector_store %arg8[%c0_17, %c0_18], %21 {strides = array<i32>} : memref<128x128xf32, #tpu.memory_space<vmem>>, vector<128x128xf32>,
    } else {
    }
    %c0 = arith.constant 0 : index
    %c0_1 = arith.constant 0 : index
    %3 = vector.load %arg2[%c0, %c0_1] : memref<128x128xf32, #tpu.memory_space<vmem>>, vector<128x128xf32>
    %4 = arith.truncf %3 : vector<128x128xf32> to vector<128x128xbf16>
    %c0_2 = arith.constant 0 : index
    %c0_3 = arith.constant 0 : index
    %5 = vector.load %arg3[%c0_2, %c0_3] : memref<128x512xbf16, #tpu.memory_space<vmem>>, vector<128x512xbf16>
    %cst = arith.constant dense<0.000000e+00> : vector<128x512xf32>
    %6 = tpu.matmul %4, %5, %cst {dimension_numbers = #tpu.dot_dimension_numbers<[1], [0], [0], [1], [0, 0, 1, 1], [], []>} : vector<128x128xbf16>, vector<128x512xbf16>, vector<128x512xf32> -> vector<128x512xf32>
    %c0_4 = arith.constant 0 : index
    %c0_5 = arith.constant 0 : index
    %7 = vector.load %arg4[%c0_4, %c0_5] : memref<1x512xf32, #tpu.memory_space<vmem>>, vector<1x512xf32>
    %8 = vector.broadcast %7 : vector<1x512xf32> to vector<128x512xf32>
    %9 = arith.addf %6, %8 : vector<128x512xf32>
    %cst_6 = arith.constant 0.000000e+00 : f32
    %10 = vector.broadcast %cst_6 : f32 to vector<128x512xf32>
    %11 = arith.maximumf %9, %10 : vector<128x512xf32>
    %c0_7 = arith.constant 0 : index
    %c0_8 = arith.constant 0 : index
    %12 = vector.load %arg8[%c0_7, %c0_8] : memref<128x128xf32, #tpu.memory_space<vmem>>, vector<128x128xf32>
    %13 = arith.truncf %11 : vector<128x512xf32> to vector<128x512xbf16>
    %c0_9 = arith.constant 0 : index
    %c0_10 = arith.constant 0 : index
    %14 = vector.load %arg5[%c0_9, %c0_10] : memref<512x128xbf16, #tpu.memory_space<vmem>>, vector<512x128xbf16>
    %cst_11 = arith.constant dense<0.000000e+00> : vector<128x128xf32>
    %15 = tpu.matmul %13, %14, %cst_11 {dimension_numbers = #tpu.dot_dimension_numbers<[1], [0], [0], [1], [0, 0, 1, 1], [], []>} : vector<128x512xbf16>, vector<512x128xbf16>, vector<128x128xf32> -> vector<128x128xf32>
    %16 = arith.addf %12, %15 : vector<128x128xf32>
    %c0_12 = arith.constant 0 : index
    %c0_13 = arith.constant 0 : index
    %17 = vector.load %arg8[%c0_12, %c0_13] : memref<128x128xf32, #tpu.memory_space<vmem>>, vector<128x128xf32>
    tpu.vector_store %arg8[%c0_12, %c0_13], %16 {strides = array<i32>} : memref<128x128xf32, #tpu.memory_space<vmem>>, vector<128x128xf32>,
    %c0_i32_14 = arith.constant 0 : i32
    %18 = arith.cmpi eq, %arg1, %c0_i32_14 : i32
    %19 = arith.extui %18 : i1 to i32
    %c0_i32_15 = arith.constant 0 : i32
    %20 = arith.cmpi ne, %19, %c0_i32_15 : i32
    scf.if %20 {
      %c0_16 = arith.constant 0 : index
      %c0_17 = arith.constant 0 : index
      %21 = vector.load %arg8[%c0_16, %c0_17] : memref<128x128xf32, #tpu.memory_space<vmem>>, vector<128x128xf32>
      %c0_18 = arith.constant 0 : index
      %c0_19 = arith.constant 0 : index
      %22 = vector.load %arg6[%c0_18, %c0_19] : memref<1x128xf32, #tpu.memory_space<vmem>>, vector<1x128xf32>
      %23 = vector.broadcast %22 : vector<1x128xf32> to vector<128x128xf32>
      %24 = arith.addf %21, %23 : vector<128x128xf32>
      %c0_20 = arith.constant 0 : index
      %c0_21 = arith.constant 0 : index
      %25 = vector.load %arg7[%c0_20, %c0_21] : memref<128x128xf32, #tpu.memory_space<vmem>>, vector<128x128xf32>
      tpu.vector_store %arg7[%c0_20, %c0_21], %24 {strides = array<i32>} : memref<128x128xf32, #tpu.memory_space<vmem>>, vector<128x128xf32>,
    } else {
    }
    return
  }
  func.func @transform_0(%arg0: i32, %arg1: i32) -> (i32, i32) {
    %c0_i32 = arith.constant 0 : i32
    %c0_i32_0 = arith.constant 0 : i32
    return %arg0, %c0_i32 : i32, i32
  }
  func.func @transform_1(%arg0: i32, %arg1: i32) -> (i32, i32) {
    %c0_i32 = arith.constant 0 : i32
    %c0_i32_0 = arith.constant 0 : i32
    return %c0_i32, %arg1 : i32, i32
  }
  func.func @transform_2(%arg0: i32, %arg1: i32) -> (i32, i32) {
    %c0_i32 = arith.constant 0 : i32
    %c0_i32_0 = arith.constant 0 : i32
    return %c0_i32, %arg1 : i32, i32
  }
  func.func @transform_3(%arg0: i32, %arg1: i32) -> (i32, i32) {
    %c0_i32 = arith.constant 0 : i32
    %c0_i32_0 = arith.constant 0 : i32
    return %arg1, %c0_i32 : i32, i32
  }
  func.func @transform_4(%arg0: i32, %arg1: i32) -> (i32, i32) {
    %c0_i32 = arith.constant 0 : i32
    %c0_i32_0 = arith.constant 0 : i32
    %c0_i32_1 = arith.constant 0 : i32
    return %c0_i32, %c0_i32_0 : i32, i32
  }
  func.func @transform_5(%arg0: i32, %arg1: i32) -> (i32, i32) {
    %c0_i32 = arith.constant 0 : i32
    %c0_i32_0 = arith.constant 0 : i32
    return %arg0, %c0_i32 : i32, i32
  }
}

</mosaic_0001>

<llo_original>
// kernel: feed_forward_forward.1
$region0: #{feed_forward_forward.1}
  #allocation0 [shape = 'u32[]', space=smem, size = 0x4, offset = 0x4, fixed_abs, tag = 'smem constant byte address 0x4 - core index']
  #allocation1 [shape = 'u32[144,128]{1,0:T(1,128)}', space=vmem, size = 0x12000, scoped, tag = 'internal scratch']
  #allocation2 [shape = 'f32[128,128]{1,0:T(8,128)}', space=vmem, size = 0x10000, scoped, tag = 'scratch operand']
  %s0 = inlined_call_operand.vmem [shape: f32[256,128], index: 0, kind: input, shape index: {}]
  %s1 = inlined_call_operand.vmem [shape: bf16[128,512], index: 1, kind: input, shape index: {}]
  %s2 = inlined_call_operand.vmem [shape: f32[1,512], index: 2, kind: input, shape index: {}]
  %s3 = inlined_call_operand.vmem [shape: bf16[512,128], index: 3, kind: input, shape index: {}]
  %s4 = inlined_call_operand.vmem [shape: f32[1,128], index: 4, kind: input, shape index: {}]
  %s5 = inlined_call_operand.hbm [shape: f32[256,128], index: 5, kind: output, shape index: {}]
  %s6 = sld [smem:[#allocation0]]
  $region61: #{feed_forward_forward.1} parent=0
    _
  %s8 = ssub.s32 1, %s6
  %s9 = scalar_select 0, %s8, %s6
  $region1: #{feed_forward_forward.1} parent=0
    #allocation3 [shape = 'u8[131072]{0}', space=vmem, size = 0x20000, scoped, tag = 'output window, operand 0']
    #allocation4 [shape = 's32[2]{0}', space=sflag, size = 0x8, scoped, tag = 'scoped memory for feed_forward_forward.1']
    %10 = vsyncpa [#allocation4], 0
    %s11 = scalar_lea.sflag [#allocation4], 1
    %12 = vsyncpa %s11, 0
    loop: start=0, step=1, limit=4
    $region2: #{feed_forward_forward.1} parent=1 // loop_pre_header
      _
    $region3: #{feed_forward_forward.1} parent=1 // loop_header
      %s14 = sphi 0, %s18
      %p15 = scmp.ge.s32.totalorder %s14, 4
      %s21 = sphi 0, %s33
      %s22 = sphi 0, %s29
      %s23 = sphi 0, %s21
      %s24 = sphi 0, %s22
      %s25 = sphi 0, %s23
      %s26 = sphi 0, %s24
      %s36 = sphi 0, %s38
      %s39 = sphi 0, %s36
      %s40 = sphi 0, %s39
      %s56 = sphi 0, %s40
      %s62 = sphi 0, %s64
      %s65 = sphi 0, %s62
      %s66 = sphi 0, %s65
      %s82 = sphi 0, %s66
      %s88 = sphi 0, %s90
      %s91 = sphi 0, %s88
      %s92 = sphi 0, %s91
      %s108 = sphi 0, %s92
      %s114 = sphi 0, %s116
      %s117 = sphi 0, %s114
      %s118 = sphi 0, %s117
      %s134 = sphi 0, %s118
      %s138 = sphi 0, %s138
      %s140 = sphi 0, %s138
      %s141 = sphi 0, %s140
      %s155 = sphi 0, %s141
      %s161 = sphi 0, %s163
      %s164 = sphi 0, %s161
      %s165 = sphi 0, %s164
      %s181 = sphi 0, %s165
    $region4: #{feed_forward_forward.1} parent=1 // loop_header_branch
      %17 = sbr.rel (%p15) target = $region8
    $region5: #{feed_forward_forward.1} parent=1 // loop_body
      %s19 = ssub.s32 %s14, 1
      %s20 = ssub.s32 %s14, 2
      %s27 = sadd.s32 1, %s22
      %p28 = scmp.ge.s32.totalorder %s27, 1
      %s29 = scalar_select %p28, 0, %s27
      %s30 = sadd.s32 1, %s21
      %s31 = scalar_select %p28, %s30, %s21
      %p32 = scmp.ge.s32.totalorder %s31, 2
      %s33 = scalar_select %p32, 0, %s31
      %s34 = ssub.s32 %s21, %s33
      %p35 = scmp.eq.s32.totalorder %s34, 0
      %s37 = sadd.s32 %s36, 1
      %s38 = scalar_select %p35, %s36, %s37
      %p41 = pneg %p35
      %p42 = scmp.eq.s32.totalorder %s14, 1
      %p43 = por %p41, %p42
      %p44 = scmp.ne.s32.totalorder %s36, %s39
      %p45 = scmp.eq.s32.totalorder %s14, 0
      %p46 = por %p44, %p45
      %p47 = scmp.ne.s32.totalorder %s36, %s39
      %p48 = scmp.eq.s32.totalorder %s19, 1
      %p49 = por %p47, %p48
      %p50 = scmp.ne.s32.totalorder %s39, %s40
      %p51 = scmp.eq.s32.totalorder %s19, 0
      %p52 = por %p50, %p51
      %p53 = scmp.ne.s32.totalorder %s39, %s40
      %p54 = scmp.eq.s32.totalorder %s20, 1
      %p55 = por %p53, %p54
      %p57 = scmp.ne.s32.totalorder %s40, %s56
      %p58 = scmp.eq.s32.totalorder %s20, 0
      %p59 = por %p57, %p58
      %s60 = ssub.s32 %s22, %s29
      %p61 = scmp.eq.s32.totalorder %s60, 0
      %s63 = sadd.s32 %s62, 1
      %s64 = scalar_select %p61, %s62, %s63
      %p67 = pneg %p61
      %p68 = scmp.eq.s32.totalorder %s14, 1
      %p69 = por %p67, %p68
      %p70 = scmp.ne.s32.totalorder %s62, %s65
      %p71 = scmp.eq.s32.totalorder %s14, 0
      %p72 = por %p70, %p71
      %p73 = scmp.ne.s32.totalorder %s62, %s65
      %p74 = scmp.eq.s32.totalorder %s19, 1
      %p75 = por %p73, %p74
      %p76 = scmp.ne.s32.totalorder %s65, %s66
      %p77 = scmp.eq.s32.totalorder %s19, 0
      %p78 = por %p76, %p77
      %p79 = scmp.ne.s32.totalorder %s65, %s66
      %p80 = scmp.eq.s32.totalorder %s20, 1
      %p81 = por %p79, %p80
      %p83 = scmp.ne.s32.totalorder %s66, %s82
      %p84 = scmp.eq.s32.totalorder %s20, 0
      %p85 = por %p83, %p84
      %s86 = ssub.s32 %s22, %s29
      %p87 = scmp.eq.s32.totalorder %s86, 0
      %s89 = sadd.s32 %s88, 1
      %s90 = scalar_select %p87, %s88, %s89
      %p93 = pneg %p87
      %p94 = scmp.eq.s32.totalorder %s14, 1
      %p95 = por %p93, %p94
      %p96 = scmp.ne.s32.totalorder %s88, %s91
      %p97 = scmp.eq.s32.totalorder %s14, 0
      %p98 = por %p96, %p97
      %p99 = scmp.ne.s32.totalorder %s88, %s91
      %p100 = scmp.eq.s32.totalorder %s19, 1
      %p101 = por %p99, %p100
      %p102 = scmp.ne.s32.totalorder %s91, %s92
      %p103 = scmp.eq.s32.totalorder %s19, 0
      %p104 = por %p102, %p103
      %p105 = scmp.ne.s32.totalorder %s91, %s92
      %p106 = scmp.eq.s32.totalorder %s20, 1
      %p107 = por %p105, %p106
      %p109 = scmp.ne.s32.totalorder %s92, %s108
      %p110 = scmp.eq.s32.totalorder %s20, 0
      %p111 = por %p109, %p110
      %s112 = ssub.s32 %s22, %s29
      %p113 = scmp.eq.s32.totalorder %s112, 0
      %s115 = sadd.s32 %s114, 1
      %s116 = scalar_select %p113, %s114, %s115
      %p119 = pneg %p113
      %p120 = scmp.eq.s32.totalorder %s14, 1
      %p121 = por %p119, %p120
      %p122 = scmp.ne.s32.totalorder %s114, %s117
      %p123 = scmp.eq.s32.totalorder %s14, 0
      %p124 = por %p122, %p123
      %p125 = scmp.ne.s32.totalorder %s114, %s117
      %p126 = scmp.eq.s32.totalorder %s19, 1
      %p127 = por %p125, %p126
      %p128 = scmp.ne.s32.totalorder %s117, %s118
      %p129 = scmp.eq.s32.totalorder %s19, 0
      %p130 = por %p128, %p129
      %p131 = scmp.ne.s32.totalorder %s117, %s118
      %p132 = scmp.eq.s32.totalorder %s20, 1
      %p133 = por %p131, %p132
      %p135 = scmp.ne.s32.totalorder %s118, %s134
      %p136 = scmp.eq.s32.totalorder %s20, 0
      %p137 = por %p135, %p136
      %s139 = sadd.s32 %s138, 1
      %p142 = scmp.eq.s32.totalorder %s14, 1
      %p143 = scmp.ne.s32.totalorder %s138, %s140
      %p144 = scmp.eq.s32.totalorder %s14, 0
      %p145 = por %p143, %p144
      %p146 = scmp.ne.s32.totalorder %s138, %s140
      %p147 = scmp.eq.s32.totalorder %s19, 1
      %p148 = por %p146, %p147
      %p149 = scmp.ne.s32.totalorder %s140, %s141
      %p150 = scmp.eq.s32.totalorder %s19, 0
      %p151 = por %p149, %p150
      %p152 = scmp.ne.s32.totalorder %s140, %s141
      %p153 = scmp.eq.s32.totalorder %s20, 1
      %p154 = por %p152, %p153
      %p156 = scmp.ne.s32.totalorder %s141, %s155
      %p157 = scmp.eq.s32.totalorder %s20, 0
      %p158 = por %p156, %p157
      %s159 = ssub.s32 %s21, %s33
      %p160 = scmp.eq.s32.totalorder %s159, 0
      %s162 = sadd.s32 %s161, 1
      %s163 = scalar_select %p160, %s161, %s162
      %p166 = pneg %p160
      %p167 = scmp.eq.s32.totalorder %s14, 1
      %p168 = por %p166, %p167
      %p169 = scmp.ne.s32.totalorder %s161, %s164
      %p170 = scmp.eq.s32.totalorder %s14, 0
      %p171 = por %p169, %p170
      %p172 = scmp.ne.s32.totalorder %s161, %s164
      %p173 = scmp.eq.s32.totalorder %s19, 1
      %p174 = por %p172, %p173
      %p175 = scmp.ne.s32.totalorder %s164, %s165
      %p176 = scmp.eq.s32.totalorder %s19, 0
      %p177 = por %p175, %p176
      %p178 = scmp.ne.s32.totalorder %s164, %s165
      %p179 = scmp.eq.s32.totalorder %s20, 1
      %p180 = por %p178, %p179
      %p182 = scmp.ne.s32.totalorder %s165, %s181
      %p183 = scmp.eq.s32.totalorder %s20, 0
      %p184 = por %p182, %p183
      %p185 = scmp.le.s32.totalorder 1, %s14
      %p186 = scmp.lt.s32.totalorder %s14, 3
      %p187 = pnand %p185, %p186
      %p188 = pneg %p187
      // Predicated region
      $region9: #{feed_forward_forward.1} parent=5 // pred_check
        _
      $region10: #{feed_forward_forward.1} parent=5 // pred_check_branch
        %190 = sbr.rel (%p187) target = $region12
      $region11: #{feed_forward_forward.1} parent=5 // pred_region
        %s191 = ssub.s32 %s14, 1
        // Predicated region
        $region13: #{feed_forward_forward.1} parent=11 // pred_check
          %p192 = pneg %p78
        $region14: #{feed_forward_forward.1} parent=11 // pred_check_branch
          %194 = sbr.rel (%p192) target = $region16
        $region15: #{feed_forward_forward.1} parent=11 // pred_region
          %s195 = smul.u32 4, %s24
          %p196 = scmp.lt.s32.totalorder %s195, 3
          %s197 = scalar_select %p196, %s195, 3
          %s198 = smul.addr %s197, 4
          %s199 = scalar_lea.vmem %s1, %s198
          %s200 = smul.u32 4, %s24
        $region16: #{feed_forward_forward.1} parent=11 // pred_fallthru
          _
        // Predicated region
        $region17: #{feed_forward_forward.1} parent=11 // pred_check
          %p201 = pneg %p104
        $region18: #{feed_forward_forward.1} parent=11 // pred_check_branch
          %203 = sbr.rel (%p201) target = $region20
        $region19: #{feed_forward_forward.1} parent=11 // pred_region
          %s204 = smul.u32 4, %s24
          %p205 = scmp.lt.s32.totalorder %s204, 3
          %s206 = scalar_select %p205, %s204, 3
          %s207 = scalar_lea.vmem %s2, %s206
          %s208 = smul.u32 4, %s24
        $region20: #{feed_forward_forward.1} parent=11 // pred_fallthru
          _
        // Predicated region
        $region21: #{feed_forward_forward.1} parent=11 // pred_check
          %p209 = pneg %p130
        $region22: #{feed_forward_forward.1} parent=11 // pred_check_branch
          %211 = sbr.rel (%p209) target = $region24
        $region23: #{feed_forward_forward.1} parent=11 // pred_region
          %s212 = smul.u32 64, %s24
          %p213 = scmp.lt.s32.totalorder %s212, 63
          %s214 = scalar_select %p213, %s212, 63
          %s215 = smul.addr %s214, 4
          %s216 = scalar_lea.vmem %s3, %s215
          %s217 = smul.u32 64, %s24
        $region24: #{feed_forward_forward.1} parent=11 // pred_fallthru
          _
        // Predicated region
        $region25: #{feed_forward_forward.1} parent=11 // pred_check
          %p218 = pneg %p151
        $region26: #{feed_forward_forward.1} parent=11 // pred_check_branch
          %220 = sbr.rel (%p218) target = $region28
        $region27: #{feed_forward_forward.1} parent=11 // pred_region
          _
        $region28: #{feed_forward_forward.1} parent=11 // pred_fallthru
          _
      $region12: #{feed_forward_forward.1} parent=5 // pred_fallthru
        _
      %p221 = scmp.lt.s32.totalorder %s14, 2
      // Predicated region
      $region29: #{feed_forward_forward.1} parent=5 // pred_check
        %p222 = pneg %p221
      $region30: #{feed_forward_forward.1} parent=5 // pred_check_branch
        %224 = sbr.rel (%p222) target = $region32
      $region31: #{feed_forward_forward.1} parent=5 // pred_region
        // Predicated region
        $region33: #{feed_forward_forward.1} parent=31 // pred_check
          %p225 = pneg %p46
        $region34: #{feed_forward_forward.1} parent=31 // pred_check_branch
          %227 = sbr.rel (%p225) target = $region36
        $region35: #{feed_forward_forward.1} parent=31 // pred_region
          %s228 = smul.u32 16, %s21
          %p229 = scmp.lt.s32.totalorder %s228, 31
          %s230 = scalar_select %p229, %s228, 31
          %s231 = smul.addr %s230, 8
          %s232 = scalar_lea.vmem %s0, %s231
          %s233 = smul.u32 16, %s21
        $region36: #{feed_forward_forward.1} parent=31 // pred_fallthru
          _
      $region32: #{feed_forward_forward.1} parent=5 // pred_fallthru
        _
      %p234 = scmp.le.s32.totalorder 1, %s14
      %p235 = scmp.lt.s32.totalorder %s14, 3
      %p236 = pnand %p234, %p235
      %p237 = pneg %p236
      // Predicated region
      $region37: #{feed_forward_forward.1} parent=5 // pred_check
        _
      $region38: #{feed_forward_forward.1} parent=5 // pred_check_branch
        %239 = sbr.rel (%p236) target = $region40
      $region39: #{feed_forward_forward.1} parent=5 // pred_region
        %s240 = ssub.s32 %s14, 1
        %s241 = smul.u32 16, %s23
        %p242 = scmp.lt.s32.totalorder %s241, 31
        %s243 = scalar_select %p242, %s241, 31
        %s244 = smul.addr %s243, 8
        %s245 = scalar_lea.vmem %s0, %s244
        %p246 = pneg %p52
        %p247 = pneg %p49
        %s248 = smul.u32 4, %s24
        %p249 = scmp.lt.s32.totalorder %s248, 3
        %s250 = scalar_select %p249, %s248, 3
        %s251 = smul.addr %s250, 4
        %s252 = scalar_lea.vmem %s1, %s251
        %p253 = pneg %p78
        %p254 = pneg %p75
        %s255 = smul.u32 4, %s24
        %p256 = scmp.lt.s32.totalorder %s255, 3
        %s257 = scalar_select %p256, %s255, 3
        %s258 = scalar_lea.vmem %s2, %s257
        %p259 = pneg %p104
        %p260 = pneg %p101
        %s261 = smul.u32 64, %s24
        %p262 = scmp.lt.s32.totalorder %s261, 63
        %s263 = scalar_select %p262, %s261, 63
        %s264 = smul.addr %s263, 4
        %s265 = scalar_lea.vmem %s3, %s264
        %p266 = pneg %p130
        %p267 = pneg %p127
        %p268 = pneg %p151
        %p269 = pneg %p148
        %p270 = pneg %p177
        %p271 = pneg %p174
        %s272 = sand.u32 %s164, 1
        %s273 = scalar_lea.sflag [#allocation4], %s272
        %s274 = sand.u32 %s164, 1
        %s275 = smul.addr %s274, 128
        %s276 = scalar_lea.vmem [#allocation3], %s275
        %s277 = smul.u32 16, %s23
        %p278 = scmp.lt.s32.totalorder %s277, 31
        %s279 = scalar_select %p278, %s277, 31
        %s280 = smul.addr %s279, 8
        %s281 = scalar_lea.vmem %s0, %s280
        %s282 = smul.u32 16, %s23
        %s283 = smul.u32 4, %s24
        %p284 = scmp.lt.s32.totalorder %s283, 3
        %s285 = scalar_select %p284, %s283, 3
        %s286 = smul.addr %s285, 4
        %s287 = scalar_lea.vmem %s1, %s286
        %s288 = smul.u32 4, %s24
        %s289 = smul.u32 4, %s24
        %p290 = scmp.lt.s32.totalorder %s289, 3
        %s291 = scalar_select %p290, %s289, 3
        %s292 = scalar_lea.vmem %s2, %s291
        %s293 = smul.u32 4, %s24
        %s294 = smul.u32 64, %s24
        %p295 = scmp.lt.s32.totalorder %s294, 63
        %s296 = scalar_select %p295, %s294, 63
        %s297 = smul.addr %s296, 4
        %s298 = scalar_lea.vmem %s3, %s297
        %s299 = smul.u32 64, %s24
        %s300 = smul.u32 16, %s23
        %p302 = scmp.eq.s32.totalorder %s24, 0
        // Predicated region
        $region41: #{feed_forward_forward.1} parent=39 // pred_check
          %p303 = pneg %p302
        $region42: #{feed_forward_forward.1} parent=39 // pred_check_branch
          %305 = sbr.rel (%p303) target = $region44
        $region43: #{feed_forward_forward.1} parent=39 // pred_region
          %306 = vst [vmem:[#allocation2] sm:$0xff] 0.0
          %307 = vst [vmem:[#allocation2 + $0x8] sm:$0xff] 0.0
          %308 = vst [vmem:[#allocation2 + $0x10] sm:$0xff] 0.0
          %309 = vst [vmem:[#allocation2 + $0x18] sm:$0xff] 0.0
          %310 = vst [vmem:[#allocation2 + $0x20] sm:$0xff] 0.0
          %311 = vst [vmem:[#allocation2 + $0x28] sm:$0xff] 0.0
          %312 = vst [vmem:[#allocation2 + $0x30] sm:$0xff] 0.0
          %313 = vst [vmem:[#allocation2 + $0x38] sm:$0xff] 0.0
          %314 = vst [vmem:[#allocation2 + $0x40] sm:$0xff] 0.0
          %315 = vst [vmem:[#allocation2 + $0x48] sm:$0xff] 0.0
          %316 = vst [vmem:[#allocation2 + $0x50] sm:$0xff] 0.0
          %317 = vst [vmem:[#allocation2 + $0x58] sm:$0xff] 0.0
          %318 = vst [vmem:[#allocation2 + $0x60] sm:$0xff] 0.0
          %319 = vst [vmem:[#allocation2 + $0x68] sm:$0xff] 0.0
          %320 = vst [vmem:[#allocation2 + $0x70] sm:$0xff] 0.0
          %321 = vst [vmem:[#allocation2 + $0x78] sm:$0xff] 0.0
        $region44: #{feed_forward_forward.1} parent=39 // pred_fallthru
          _
        %v322 = vld [vmem:[%s281] sm:$0xff]
        %v323 = vld [vmem:[%s281 + $0x8] sm:$0xff]
        %v324 = vld [vmem:[%s281 + $0x10] sm:$0xff]
        %v325 = vld [vmem:[%s281 + $0x18] sm:$0xff]
        %v326 = vld [vmem:[%s281 + $0x20] sm:$0xff]
        %v327 = vld [vmem:[%s281 + $0x28] sm:$0xff]
        %v328 = vld [vmem:[%s281 + $0x30] sm:$0xff]
        %v329 = vld [vmem:[%s281 + $0x38] sm:$0xff]
        %v330 = vld [vmem:[%s281 + $0x40] sm:$0xff]
        %v331 = vld [vmem:[%s281 + $0x48] sm:$0xff]
        %v332 = vld [vmem:[%s281 + $0x50] sm:$0xff]
        %v333 = vld [vmem:[%s281 + $0x58] sm:$0xff]
        %v334 = vld [vmem:[%s281 + $0x60] sm:$0xff]
        %v335 = vld [vmem:[%s281 + $0x68] sm:$0xff]
        %v336 = vld [vmem:[%s281 + $0x70] sm:$0xff]
        %v337 = vld [vmem:[%s281 + $0x78] sm:$0xff]
        %v338 = vpack.c.bf16 %v323, %v322
        %v339 = vpack.c.bf16 %v325, %v324
        %v340 = vpack.c.bf16 %v327, %v326
        %v341 = vpack.c.bf16 %v329, %v328
        %v342 = vpack.c.bf16 %v331, %v330
        %v343 = vpack.c.bf16 %v333, %v332
        %v344 = vpack.c.bf16 %v335, %v334
        %v345 = vpack.c.bf16 %v337, %v336
        %v346 = vld [vmem:[%s287] sm:$0xff]
        %v347 = vld [vmem:[%s287 + $0x8] sm:$0xff]
        %v348 = vld [vmem:[%s287 + $0x10] sm:$0xff]
        %v349 = vld [vmem:[%s287 + $0x18] sm:$0xff]
        %v350 = vld [vmem:[%s287 + $0x20] sm:$0xff]
        %v351 = vld [vmem:[%s287 + $0x28] sm:$0xff]
        %v352 = vld [vmem:[%s287 + $0x30] sm:$0xff]
        %v353 = vld [vmem:[%s287 + $0x38] sm:$0xff]
        %v354 = vld [vmem:[%s287 + $0x40] sm:$0xff]
        %v355 = vld [vmem:[%s287 + $0x48] sm:$0xff]
        %v356 = vld [vmem:[%s287 + $0x50] sm:$0xff]
        %v357 = vld [vmem:[%s287 + $0x58] sm:$0xff]
        %v358 = vld [vmem:[%s287 + $0x60] sm:$0xff]
        %v359 = vld [vmem:[%s287 + $0x68] sm:$0xff]
        %v360 = vld [vmem:[%s287 + $0x70] sm:$0xff]
        %v361 = vld [vmem:[%s287 + $0x78] sm:$0xff]
        %v362 = vld [vmem:[%s287 + $0x80] sm:$0xff]
        %v363 = vld [vmem:[%s287 + $0x88] sm:$0xff]
        %v364 = vld [vmem:[%s287 + $0x90] sm:$0xff]
        %v365 = vld [vmem:[%s287 + $0x98] sm:$0xff]
        %v366 = vld [vmem:[%s287 + $0xa0] sm:$0xff]
        %v367 = vld [vmem:[%s287 + $0xa8] sm:$0xff]
        %v368 = vld [vmem:[%s287 + $0xb0] sm:$0xff]
        %v369 = vld [vmem:[%s287 + $0xb8] sm:$0xff]
        %v370 = vld [vmem:[%s287 + $0xc0] sm:$0xff]
        %v371 = vld [vmem:[%s287 + $0xc8] sm:$0xff]
        %v372 = vld [vmem:[%s287 + $0xd0] sm:$0xff]
        %v373 = vld [vmem:[%s287 + $0xd8] sm:$0xff]
        %v374 = vld [vmem:[%s287 + $0xe0] sm:$0xff]
        %v375 = vld [vmem:[%s287 + $0xe8] sm:$0xff]
        %v376 = vld [vmem:[%s287 + $0xf0] sm:$0xff]
        %v377 = vld [vmem:[%s287 + $0xf8] sm:$0xff]
        %v378 = vld [vmem:[%s292] sm:$0xf]
        %v380 = vlaneseq
        %v381 = vshrl.u32 %v380, 7
        %v382 = vsub.s32 0, %v381
        %v383 = vrot.slane %v378, %v382
        %v384 = vlaneseq
        %v385 = vshrl.u32 %v384, 7
        %v386 = vsub.s32 1, %v385
        %v387 = vrot.slane %v378, %v386
        %v388 = vlaneseq
        %v389 = vshrl.u32 %v388, 7
        %v390 = vsub.s32 2, %v389
        %v391 = vrot.slane %v378, %v390
        %v392 = vlaneseq
        %v393 = vshrl.u32 %v392, 7
        %v394 = vsub.s32 3, %v393
        %v395 = vrot.slane %v378, %v394
        %v432 = vunpack.c.l.b16 %v346
        %v433 = vunpack.c.h.b16 %v346
        %v434 = vunpack.c.l.b16 %v347
        %v435 = vunpack.c.h.b16 %v347
        %v436 = vunpack.c.l.b16 %v348
        %v437 = vunpack.c.h.b16 %v348
        %v438 = vunpack.c.l.b16 %v349
        %v439 = vunpack.c.h.b16 %v349
        %v440 = vunpack.c.l.b16 %v350
        %v441 = vunpack.c.h.b16 %v350
        %v442 = vunpack.c.l.b16 %v351
        %v443 = vunpack.c.h.b16 %v351
        %v444 = vunpack.c.l.b16 %v352
        %v445 = vunpack.c.h.b16 %v352
        %v446 = vunpack.c.l.b16 %v353
        %v447 = vunpack.c.h.b16 %v353
        %v448 = vunpack.c.l.b16 %v354
        %v449 = vunpack.c.h.b16 %v354
        %v450 = vunpack.c.l.b16 %v355
        %v451 = vunpack.c.h.b16 %v355
        %v452 = vunpack.c.l.b16 %v356
        %v453 = vunpack.c.h.b16 %v356
        %v454 = vunpack.c.l.b16 %v357
        %v455 = vunpack.c.h.b16 %v357
        %v456 = vunpack.c.l.b16 %v358
        %v457 = vunpack.c.h.b16 %v358
        %v458 = vunpack.c.l.b16 %v359
        %v459 = vunpack.c.h.b16 %v359
        %v460 = vunpack.c.l.b16 %v360
        %v461 = vunpack.c.h.b16 %v360
        %v462 = vunpack.c.l.b16 %v361
        %v463 = vunpack.c.h.b16 %v361
        %v464 = vunpack.c.l.b16 %v362
        %v465 = vunpack.c.h.b16 %v362
        %v466 = vunpack.c.l.b16 %v363
        %v467 = vunpack.c.h.b16 %v363
        %v468 = vunpack.c.l.b16 %v364
        %v469 = vunpack.c.h.b16 %v364
        %v470 = vunpack.c.l.b16 %v365
        %v471 = vunpack.c.h.b16 %v365
        %v472 = vunpack.c.l.b16 %v366
        %v473 = vunpack.c.h.b16 %v366
        %v474 = vunpack.c.l.b16 %v367
        %v475 = vunpack.c.h.b16 %v367
        %v476 = vunpack.c.l.b16 %v368
        %v477 = vunpack.c.h.b16 %v368
        %v478 = vunpack.c.l.b16 %v369
        %v479 = vunpack.c.h.b16 %v369
        %v480 = vunpack.c.l.b16 %v370
        %v481 = vunpack.c.h.b16 %v370
        %v482 = vunpack.c.l.b16 %v371
        %v483 = vunpack.c.h.b16 %v371
        %v484 = vunpack.c.l.b16 %v372
        %v485 = vunpack.c.h.b16 %v372
        %v486 = vunpack.c.l.b16 %v373
        %v487 = vunpack.c.h.b16 %v373
        %v488 = vunpack.c.l.b16 %v374
        %v489 = vunpack.c.h.b16 %v374
        %v490 = vunpack.c.l.b16 %v375
        %v491 = vunpack.c.h.b16 %v375
        %v492 = vunpack.c.l.b16 %v376
        %v493 = vunpack.c.h.b16 %v376
        %v494 = vunpack.c.l.b16 %v377
        %v495 = vunpack.c.h.b16 %v377
        %v496 = vpack.c.b16 %v436, %v432
        %v497 = vpack.c.b16 %v437, %v433
        %v498 = vpack.c.b16 %v438, %v434
        %v499 = vpack.c.b16 %v439, %v435
        %v500 = vpack.c.b16 %v444, %v440
        %v501 = vpack.c.b16 %v445, %v441
        %v502 = vpack.c.b16 %v446, %v442
        %v503 = vpack.c.b16 %v447, %v443
        %v504 = vpack.c.b16 %v452, %v448
        %v505 = vpack.c.b16 %v453, %v449
        %v506 = vpack.c.b16 %v454, %v450
        %v507 = vpack.c.b16 %v455, %v451
        %v508 = vpack.c.b16 %v460, %v456
        %v509 = vpack.c.b16 %v461, %v457
        %v510 = vpack.c.b16 %v462, %v458
        %v511 = vpack.c.b16 %v463, %v459
        %v512 = vpack.c.b16 %v468, %v464
        %v513 = vpack.c.b16 %v469, %v465
        %v514 = vpack.c.b16 %v470, %v466
        %v515 = vpack.c.b16 %v471, %v467
        %v516 = vpack.c.b16 %v476, %v472
        %v517 = vpack.c.b16 %v477, %v473
        %v518 = vpack.c.b16 %v478, %v474
        %v519 = vpack.c.b16 %v479, %v475
        %v520 = vpack.c.b16 %v484, %v480
        %v521 = vpack.c.b16 %v485, %v481
        %v522 = vpack.c.b16 %v486, %v482
        %v523 = vpack.c.b16 %v487, %v483
        %v524 = vpack.c.b16 %v492, %v488
        %v525 = vpack.c.b16 %v493, %v489
        %v526 = vpack.c.b16 %v494, %v490
        %v527 = vpack.c.b16 %v495, %v491
        %560 = vmatprep.subr.bf16.mxu0 %v525
        %561 = vmatpush1.bf16.msra.mxu0 %v524
        %562 = vmatprep.subr.bf16.mxu0 %v521
        %563 = vmatpush1.bf16.msra.mxu0 %v520
        %564 = vmatprep.subr.bf16.mxu0 %v517
        %565 = vmatpush1.bf16.msra.mxu0 %v516
        %566 = vmatprep.subr.bf16.mxu0 %v513
        %567 = vmatpush1.bf16.msra.mxu0 %v512
        %568 = vmatprep.subr.bf16.mxu0 %v509
        %569 = vmatpush1.bf16.msra.mxu0 %v508
        %570 = vmatprep.subr.bf16.mxu0 %v505
        %571 = vmatpush1.bf16.msra.mxu0 %v504
        %572 = vmatprep.subr.bf16.mxu0 %v501
        %573 = vmatpush1.bf16.msra.mxu0 %v500
        %574 = vmatprep.subr.bf16.mxu0 %v497
        %575 = vmatpush1.bf16.msra.mxu0 %v496
        %576 = vmatprep.subr.bf16.mxu0 0
        %577 = vmatpush2.bf16.msra.mxu0 0
        %578 = vmatprep.subr.bf16.mxu0 0
        %579 = vmatpush2.bf16.msra.mxu0 0
        %580 = vmatprep.subr.bf16.mxu0 0
        %581 = vmatpush2.bf16.msra.mxu0 0
        %582 = vmatprep.subr.bf16.mxu0 0
        %583 = vmatpush2.bf16.msra.mxu0 0
        %584 = vmatprep.subr.bf16.mxu0 0
        %585 = vmatpush2.bf16.msra.mxu0 0
        %586 = vmatprep.subr.bf16.mxu0 0
        %587 = vmatpush2.bf16.msra.mxu0 0
        %588 = vmatprep.subr.bf16.mxu0 0
        %589 = vmatpush2.bf16.msra.mxu0 0
        %590 = vmatprep.subr.bf16.mxu0 0
        %591 = vmatpush2.bf16.msra.mxu0 0
        %592 = vmatprep.mubr.bf16.mxu0 0
        %593 = vmatmul.mubr.bf16.gmra.mxu0 %v338
        %v594 = vpop.f32.mrf.mxu0
        %v595 = vadd.f32 %v383, %v594
        %v596 = vpop.f32.mrf.mxu0
        %v597 = vadd.f32 %v387, %v596
        %v598 = vpop.f32.mrf.mxu0
        %v599 = vadd.f32 %v383, %v598
        %v600 = vpop.f32.mrf.mxu0
        %v601 = vadd.f32 %v387, %v600
        %602 = vmatprep.mubr.bf16.mxu0 0
        %603 = vmatmul.mubr.bf16.gmra.mxu0 %v339
        %v604 = vpop.f32.mrf.mxu0
        %v605 = vadd.f32 %v383, %v604
        %v606 = vpop.f32.mrf.mxu0
        %v607 = vadd.f32 %v387, %v606
        %v608 = vpop.f32.mrf.mxu0
        %v609 = vadd.f32 %v383, %v608
        %v610 = vpop.f32.mrf.mxu0
        %v611 = vadd.f32 %v387, %v610
        %612 = vmatprep.mubr.bf16.mxu0 0
        %613 = vmatmul.mubr.bf16.gmra.mxu0 %v340
        %v614 = vpop.f32.mrf.mxu0
        %v615 = vadd.f32 %v383, %v614
        %v616 = vpop.f32.mrf.mxu0
        %v617 = vadd.f32 %v387, %v616
        %v618 = vpop.f32.mrf.mxu0
        %v619 = vadd.f32 %v383, %v618
        %v620 = vpop.f32.mrf.mxu0
        %v621 = vadd.f32 %v387, %v620
        %622 = vmatprep.mubr.bf16.mxu0 0
        %623 = vmatmul.mubr.bf16.gmra.mxu0 %v341
        %v624 = vpop.f32.mrf.mxu0
        %v625 = vadd.f32 %v383, %v624
        %v626 = vpop.f32.mrf.mxu0
        %v627 = vadd.f32 %v387, %v626
        %v628 = vpop.f32.mrf.mxu0
        %v629 = vadd.f32 %v383, %v628
        %v630 = vpop.f32.mrf.mxu0
        %v631 = vadd.f32 %v387, %v630
        %632 = vmatprep.mubr.bf16.mxu0 0
        %633 = vmatmul.mubr.bf16.gmra.mxu0 %v342
        %v634 = vpop.f32.mrf.mxu0
        %v635 = vadd.f32 %v383, %v634
        %v636 = vpop.f32.mrf.mxu0
        %v637 = vadd.f32 %v387, %v636
        %v638 = vpop.f32.mrf.mxu0
        %v639 = vadd.f32 %v383, %v638
        %v640 = vpop.f32.mrf.mxu0
        %v641 = vadd.f32 %v387, %v640
        %642 = vmatprep.mubr.bf16.mxu0 0
        %643 = vmatmul.mubr.bf16.gmra.mxu0 %v343
        %v644 = vpop.f32.mrf.mxu0
        %v645 = vadd.f32 %v383, %v644
        %v646 = vpop.f32.mrf.mxu0
        %v647 = vadd.f32 %v387, %v646
        %v648 = vpop.f32.mrf.mxu0
        %v649 = vadd.f32 %v383, %v648
        %v650 = vpop.f32.mrf.mxu0
        %v651 = vadd.f32 %v387, %v650
        %652 = vmatprep.mubr.bf16.mxu0 0
        %653 = vmatmul.mubr.bf16.gmra.mxu0 %v344
        %v654 = vpop.f32.mrf.mxu0
        %v655 = vadd.f32 %v383, %v654
        %v656 = vpop.f32.mrf.mxu0
        %v657 = vadd.f32 %v387, %v656
        %v658 = vpop.f32.mrf.mxu0
        %v659 = vadd.f32 %v383, %v658
        %v660 = vpop.f32.mrf.mxu0
        %v661 = vadd.f32 %v387, %v660
        %662 = vmatprep.mubr.bf16.mxu0 0
        %663 = vmatmul.mubr.bf16.gmra.mxu0 %v345
        %v664 = vpop.f32.mrf.mxu0
        %v665 = vadd.f32 %v383, %v664
        %v666 = vpop.f32.mrf.mxu0
        %v667 = vadd.f32 %v387, %v666
        %v668 = vpop.f32.mrf.mxu0
        %v669 = vadd.f32 %v383, %v668
        %v670 = vpop.f32.mrf.mxu0
        %v671 = vadd.f32 %v387, %v670
        %672 = vdwg.mxu0
        %673 = vmatprep.subr.bf16.mxu0 %v527
        %674 = vmatpush1.bf16.msra.mxu0 %v526
        %675 = vmatprep.subr.bf16.mxu0 %v523
        %676 = vmatpush1.bf16.msra.mxu0 %v522
        %677 = vmatprep.subr.bf16.mxu0 %v519
        %678 = vmatpush1.bf16.msra.mxu0 %v518
        %679 = vmatprep.subr.bf16.mxu0 %v515
        %680 = vmatpush1.bf16.msra.mxu0 %v514
        %681 = vmatprep.subr.bf16.mxu0 %v511
        %682 = vmatpush1.bf16.msra.mxu0 %v510
        %683 = vmatprep.subr.bf16.mxu0 %v507
        %684 = vmatpush1.bf16.msra.mxu0 %v506
        %685 = vmatprep.subr.bf16.mxu0 %v503
        %686 = vmatpush1.bf16.msra.mxu0 %v502
        %687 = vmatprep.subr.bf16.mxu0 %v499
        %688 = vmatpush1.bf16.msra.mxu0 %v498
        %689 = vmatprep.subr.bf16.mxu0 0
        %690 = vmatpush2.bf16.msra.mxu0 0
        %691 = vmatprep.subr.bf16.mxu0 0
        %692 = vmatpush2.bf16.msra.mxu0 0
        %693 = vmatprep.subr.bf16.mxu0 0
        %694 = vmatpush2.bf16.msra.mxu0 0
        %695 = vmatprep.subr.bf16.mxu0 0
        %696 = vmatpush2.bf16.msra.mxu0 0
        %697 = vmatprep.subr.bf16.mxu0 0
        %698 = vmatpush2.bf16.msra.mxu0 0
        %699 = vmatprep.subr.bf16.mxu0 0
        %700 = vmatpush2.bf16.msra.mxu0 0
        %701 = vmatprep.subr.bf16.mxu0 0
        %702 = vmatpush2.bf16.msra.mxu0 0
        %703 = vmatprep.subr.bf16.mxu0 0
        %704 = vmatpush2.bf16.msra.mxu0 0
        %705 = vmatprep.mubr.bf16.mxu0 0
        %706 = vmatmul.mubr.bf16.gmra.mxu0 %v338
        %v707 = vpop.f32.mrf.mxu0
        %v708 = vadd.f32 %v391, %v707
        %v709 = vpop.f32.mrf.mxu0
        %v710 = vadd.f32 %v395, %v709
        %v711 = vpop.f32.mrf.mxu0
        %v712 = vadd.f32 %v391, %v711
        %v713 = vpop.f32.mrf.mxu0
        %v714 = vadd.f32 %v395, %v713
        %715 = vmatprep.mubr.bf16.mxu0 0
        %716 = vmatmul.mubr.bf16.gmra.mxu0 %v339
        %v717 = vpop.f32.mrf.mxu0
        %v718 = vadd.f32 %v391, %v717
        %v719 = vpop.f32.mrf.mxu0
        %v720 = vadd.f32 %v395, %v719
        %v721 = vpop.f32.mrf.mxu0
        %v722 = vadd.f32 %v391, %v721
        %v723 = vpop.f32.mrf.mxu0
        %v724 = vadd.f32 %v395, %v723
        %725 = vmatprep.mubr.bf16.mxu0 0
        %726 = vmatmul.mubr.bf16.gmra.mxu0 %v340
        %v727 = vpop.f32.mrf.mxu0
        %v728 = vadd.f32 %v391, %v727
        %v729 = vpop.f32.mrf.mxu0
        %v730 = vadd.f32 %v395, %v729
        %v731 = vpop.f32.mrf.mxu0
        %v732 = vadd.f32 %v391, %v731
        %v733 = vpop.f32.mrf.mxu0
        %v734 = vadd.f32 %v395, %v733
        %735 = vmatprep.mubr.bf16.mxu0 0
        %736 = vmatmul.mubr.bf16.gmra.mxu0 %v341
        %v737 = vpop.f32.mrf.mxu0
        %v738 = vadd.f32 %v391, %v737
        %v739 = vpop.f32.mrf.mxu0
        %v740 = vadd.f32 %v395, %v739
        %v741 = vpop.f32.mrf.mxu0
        %v742 = vadd.f32 %v391, %v741
        %v743 = vpop.f32.mrf.mxu0
        %v744 = vadd.f32 %v395, %v743
        %745 = vmatprep.mubr.bf16.mxu0 0
        %746 = vmatmul.mubr.bf16.gmra.mxu0 %v342
        %v747 = vpop.f32.mrf.mxu0
        %v748 = vadd.f32 %v391, %v747
        %v749 = vpop.f32.mrf.mxu0
        %v750 = vadd.f32 %v395, %v749
        %v751 = vpop.f32.mrf.mxu0
        %v752 = vadd.f32 %v391, %v751
        %v753 = vpop.f32.mrf.mxu0
        %v754 = vadd.f32 %v395, %v753
        %755 = vmatprep.mubr.bf16.mxu0 0
        %756 = vmatmul.mubr.bf16.gmra.mxu0 %v343
        %v757 = vpop.f32.mrf.mxu0
        %v758 = vadd.f32 %v391, %v757
        %v759 = vpop.f32.mrf.mxu0
        %v760 = vadd.f32 %v395, %v759
        %v761 = vpop.f32.mrf.mxu0
        %v762 = vadd.f32 %v391, %v761
        %v763 = vpop.f32.mrf.mxu0
        %v764 = vadd.f32 %v395, %v763
        %765 = vmatprep.mubr.bf16.mxu0 0
        %766 = vmatmul.mubr.bf16.gmra.mxu0 %v344
        %v767 = vpop.f32.mrf.mxu0
        %v768 = vadd.f32 %v391, %v767
        %v769 = vpop.f32.mrf.mxu0
        %v770 = vadd.f32 %v395, %v769
        %v771 = vpop.f32.mrf.mxu0
        %v772 = vadd.f32 %v391, %v771
        %v773 = vpop.f32.mrf.mxu0
        %v774 = vadd.f32 %v395, %v773
        %775 = vmatprep.mubr.bf16.mxu0 0
        %776 = vmatmul.mubr.bf16.gmra.mxu0 %v345
        %v777 = vpop.f32.mrf.mxu0
        %v778 = vadd.f32 %v391, %v777
        %v779 = vpop.f32.mrf.mxu0
        %v780 = vadd.f32 %v395, %v779
        %v781 = vpop.f32.mrf.mxu0
        %v782 = vadd.f32 %v391, %v781
        %v783 = vpop.f32.mrf.mxu0
        %v784 = vadd.f32 %v395, %v783
        %785 = vdwg.mxu0
        %v786 = vmax.f32 %v595, 0.0
        %v787 = vmax.f32 %v597, 0.0
        %v788 = vmax.f32 %v708, 0.0
        %v789 = vmax.f32 %v710, 0.0
        %v790 = vmax.f32 %v599, 0.0
        %v791 = vmax.f32 %v601, 0.0
        %v792 = vmax.f32 %v712, 0.0
        %v793 = vmax.f32 %v714, 0.0
        %v794 = vmax.f32 %v605, 0.0
        %v795 = vmax.f32 %v607, 0.0
        %v796 = vmax.f32 %v718, 0.0
        %v797 = vmax.f32 %v720, 0.0
        %v798 = vmax.f32 %v609, 0.0
        %v799 = vmax.f32 %v611, 0.0
        %v800 = vmax.f32 %v722, 0.0
        %v801 = vmax.f32 %v724, 0.0
        %v802 = vmax.f32 %v615, 0.0
        %v803 = vmax.f32 %v617, 0.0
        %v804 = vmax.f32 %v728, 0.0
        %v805 = vmax.f32 %v730, 0.0
        %v806 = vmax.f32 %v619, 0.0
        %v807 = vmax.f32 %v621, 0.0
        %v808 = vmax.f32 %v732, 0.0
        %v809 = vmax.f32 %v734, 0.0
        %v810 = vmax.f32 %v625, 0.0
        %v811 = vmax.f32 %v627, 0.0
        %v812 = vmax.f32 %v738, 0.0
        %v813 = vmax.f32 %v740, 0.0
        %v814 = vmax.f32 %v629, 0.0
        %v815 = vmax.f32 %v631, 0.0
        %v816 = vmax.f32 %v742, 0.0
        %v817 = vmax.f32 %v744, 0.0
        %v818 = vmax.f32 %v635, 0.0
        %v819 = vmax.f32 %v637, 0.0
        %v820 = vmax.f32 %v748, 0.0
        %v821 = vmax.f32 %v750, 0.0
        %v822 = vmax.f32 %v639, 0.0
        %v823 = vmax.f32 %v641, 0.0
        %v824 = vmax.f32 %v752, 0.0
        %v825 = vmax.f32 %v754, 0.0
        %v826 = vmax.f32 %v645, 0.0
        %v827 = vmax.f32 %v647, 0.0
        %v828 = vmax.f32 %v758, 0.0
        %v829 = vmax.f32 %v760, 0.0
        %v830 = vmax.f32 %v649, 0.0
        %v831 = vmax.f32 %v651, 0.0
        %v832 = vmax.f32 %v762, 0.0
        %v833 = vmax.f32 %v764, 0.0
        %v834 = vmax.f32 %v655, 0.0
        %v835 = vmax.f32 %v657, 0.0
        %v836 = vmax.f32 %v768, 0.0
        %v837 = vmax.f32 %v770, 0.0
        %v838 = vmax.f32 %v659, 0.0
        %v839 = vmax.f32 %v661, 0.0
        %v840 = vmax.f32 %v772, 0.0
        %v841 = vmax.f32 %v774, 0.0
        %v842 = vmax.f32 %v665, 0.0
        %v843 = vmax.f32 %v667, 0.0
        %v844 = vmax.f32 %v778, 0.0
        %v845 = vmax.f32 %v780, 0.0
        %v846 = vmax.f32 %v669, 0.0
        %v847 = vmax.f32 %v671, 0.0
        %v848 = vmax.f32 %v782, 0.0
        %v849 = vmax.f32 %v784, 0.0
        %v850 = vld [vmem:[#allocation2] sm:$0xff]
        %v851 = vld [vmem:[#allocation2 + $0x8] sm:$0xff]
        %v852 = vld [vmem:[#allocation2 + $0x10] sm:$0xff]
        %v853 = vld [vmem:[#allocation2 + $0x18] sm:$0xff]
        %v854 = vld [vmem:[#allocation2 + $0x20] sm:$0xff]
        %v855 = vld [vmem:[#allocation2 + $0x28] sm:$0xff]
        %v856 = vld [vmem:[#allocation2 + $0x30] sm:$0xff]
        %v857 = vld [vmem:[#allocation2 + $0x38] sm:$0xff]
        %v858 = vld [vmem:[#allocation2 + $0x40] sm:$0xff]
        %v859 = vld [vmem:[#allocation2 + $0x48] sm:$0xff]
        %v860 = vld [vmem:[#allocation2 + $0x50] sm:$0xff]
        %v861 = vld [vmem:[#allocation2 + $0x58] sm:$0xff]
        %v862 = vld [vmem:[#allocation2 + $0x60] sm:$0xff]
        %v863 = vld [vmem:[#allocation2 + $0x68] sm:$0xff]
        %v864 = vld [vmem:[#allocation2 + $0x70] sm:$0xff]
        %v865 = vld [vmem:[#allocation2 + $0x78] sm:$0xff]
        %v866 = vpack.c.bf16 %v790, %v786
        %v867 = vpack.c.bf16 %v791, %v787
        %v868 = vpack.c.bf16 %v792, %v788
        %v869 = vpack.c.bf16 %v793, %v789
        %v870 = vpack.c.bf16 %v798, %v794
        %v871 = vpack.c.bf16 %v799, %v795
        %v872 = vpack.c.bf16 %v800, %v796
        %v873 = vpack.c.bf16 %v801, %v797
        %v874 = vpack.c.bf16 %v806, %v802
        %v875 = vpack.c.bf16 %v807, %v803
        %v876 = vpack.c.bf16 %v808, %v804
        %v877 = vpack.c.bf16 %v809, %v805
        %v878 = vpack.c.bf16 %v814, %v810
        %v879 = vpack.c.bf16 %v815, %v811
        %v880 = vpack.c.bf16 %v816, %v812
        %v881 = vpack.c.bf16 %v817, %v813
        %v882 = vpack.c.bf16 %v822, %v818
        %v883 = vpack.c.bf16 %v823, %v819
        %v884 = vpack.c.bf16 %v824, %v820
        %v885 = vpack.c.bf16 %v825, %v821
        %v886 = vpack.c.bf16 %v830, %v826
        %v887 = vpack.c.bf16 %v831, %v827
        %v888 = vpack.c.bf16 %v832, %v828
        %v889 = vpack.c.bf16 %v833, %v829
        %v890 = vpack.c.bf16 %v838, %v834
        %v891 = vpack.c.bf16 %v839, %v835
        %v892 = vpack.c.bf16 %v840, %v836
        %v893 = vpack.c.bf16 %v841, %v837
        %v894 = vpack.c.bf16 %v846, %v842
        %v895 = vpack.c.bf16 %v847, %v843
        %v896 = vpack.c.bf16 %v848, %v844
        %v897 = vpack.c.bf16 %v849, %v845
        %v898 = vld [vmem:[%s298] sm:$0xf]
        %v899 = vld [vmem:[%s298 + $0x4] sm:$0xf]
        %v900 = vld [vmem:[%s298 + $0x8] sm:$0xf]
        %v901 = vld [vmem:[%s298 + $0xc] sm:$0xf]
        %v902 = vld [vmem:[%s298 + $0x10] sm:$0xf]
        %v903 = vld [vmem:[%s298 + $0x14] sm:$0xf]
        %v904 = vld [vmem:[%s298 + $0x18] sm:$0xf]
        %v905 = vld [vmem:[%s298 + $0x1c] sm:$0xf]
        %v906 = vld [vmem:[%s298 + $0x20] sm:$0xf]
        %v907 = vld [vmem:[%s298 + $0x24] sm:$0xf]
        %v908 = vld [vmem:[%s298 + $0x28] sm:$0xf]
        %v909 = vld [vmem:[%s298 + $0x2c] sm:$0xf]
        %v910 = vld [vmem:[%s298 + $0x30] sm:$0xf]
        %v911 = vld [vmem:[%s298 + $0x34] sm:$0xf]
        %v912 = vld [vmem:[%s298 + $0x38] sm:$0xf]
        %v913 = vld [vmem:[%s298 + $0x3c] sm:$0xf]
        %v914 = vld [vmem:[%s298 + $0x40] sm:$0xf]
        %v915 = vld [vmem:[%s298 + $0x44] sm:$0xf]
        %v916 = vld [vmem:[%s298 + $0x48] sm:$0xf]
        %v917 = vld [vmem:[%s298 + $0x4c] sm:$0xf]
        %v918 = vld [vmem:[%s298 + $0x50] sm:$0xf]
        %v919 = vld [vmem:[%s298 + $0x54] sm:$0xf]
        %v920 = vld [vmem:[%s298 + $0x58] sm:$0xf]
        %v921 = vld [vmem:[%s298 + $0x5c] sm:$0xf]
        %v922 = vld [vmem:[%s298 + $0x60] sm:$0xf]
        %v923 = vld [vmem:[%s298 + $0x64] sm:$0xf]
        %v924 = vld [vmem:[%s298 + $0x68] sm:$0xf]
        %v925 = vld [vmem:[%s298 + $0x6c] sm:$0xf]
        %v926 = vld [vmem:[%s298 + $0x70] sm:$0xf]
        %v927 = vld [vmem:[%s298 + $0x74] sm:$0xf]
        %v928 = vld [vmem:[%s298 + $0x78] sm:$0xf]
        %v929 = vld [vmem:[%s298 + $0x7c] sm:$0xf]
        %v930 = vld [vmem:[%s298 + $0x80] sm:$0xf]
        %v931 = vld [vmem:[%s298 + $0x84] sm:$0xf]
        %v932 = vld [vmem:[%s298 + $0x88] sm:$0xf]
        %v933 = vld [vmem:[%s298 + $0x8c] sm:$0xf]
        %v934 = vld [vmem:[%s298 + $0x90] sm:$0xf]
        %v935 = vld [vmem:[%s298 + $0x94] sm:$0xf]
        %v936 = vld [vmem:[%s298 + $0x98] sm:$0xf]
        %v937 = vld [vmem:[%s298 + $0x9c] sm:$0xf]
        %v938 = vld [vmem:[%s298 + $0xa0] sm:$0xf]
        %v939 = vld [vmem:[%s298 + $0xa4] sm:$0xf]
        %v940 = vld [vmem:[%s298 + $0xa8] sm:$0xf]
        %v941 = vld [vmem:[%s298 + $0xac] sm:$0xf]
        %v942 = vld [vmem:[%s298 + $0xb0] sm:$0xf]
        %v943 = vld [vmem:[%s298 + $0xb4] sm:$0xf]
        %v944 = vld [vmem:[%s298 + $0xb8] sm:$0xf]
        %v945 = vld [vmem:[%s298 + $0xbc] sm:$0xf]
        %v946 = vld [vmem:[%s298 + $0xc0] sm:$0xf]
        %v947 = vld [vmem:[%s298 + $0xc4] sm:$0xf]
        %v948 = vld [vmem:[%s298 + $0xc8] sm:$0xf]
        %v949 = vld [vmem:[%s298 + $0xcc] sm:$0xf]
        %v950 = vld [vmem:[%s298 + $0xd0] sm:$0xf]
        %v951 = vld [vmem:[%s298 + $0xd4] sm:$0xf]
        %v952 = vld [vmem:[%s298 + $0xd8] sm:$0xf]
        %v953 = vld [vmem:[%s298 + $0xdc] sm:$0xf]
        %v954 = vld [vmem:[%s298 + $0xe0] sm:$0xf]
        %v955 = vld [vmem:[%s298 + $0xe4] sm:$0xf]
        %v956 = vld [vmem:[%s298 + $0xe8] sm:$0xf]
        %v957 = vld [vmem:[%s298 + $0xec] sm:$0xf]
        %v958 = vld [vmem:[%s298 + $0xf0] sm:$0xf]
        %v959 = vld [vmem:[%s298 + $0xf4] sm:$0xf]
        %v960 = vld [vmem:[%s298 + $0xf8] sm:$0xf]
        %v961 = vld [vmem:[%s298 + $0xfc] sm:$0xf]
        %v1026 = vunpack.c.l.b16 %v898
        %v1027 = vunpack.c.l.b16 %v899
        %v1028 = vunpack.c.l.b16 %v900
        %v1029 = vunpack.c.l.b16 %v901
        %v1030 = vunpack.c.l.b16 %v902
        %v1031 = vunpack.c.l.b16 %v903
        %v1032 = vunpack.c.l.b16 %v904
        %v1033 = vunpack.c.l.b16 %v905
        %v1034 = vunpack.c.l.b16 %v906
        %v1035 = vunpack.c.l.b16 %v907
        %v1036 = vunpack.c.l.b16 %v908
        %v1037 = vunpack.c.l.b16 %v909
        %v1038 = vunpack.c.l.b16 %v910
        %v1039 = vunpack.c.l.b16 %v911
        %v1040 = vunpack.c.l.b16 %v912
        %v1041 = vunpack.c.l.b16 %v913
        %v1042 = vunpack.c.l.b16 %v914
        %v1043 = vunpack.c.l.b16 %v915
        %v1044 = vunpack.c.l.b16 %v916
        %v1045 = vunpack.c.l.b16 %v917
        %v1046 = vunpack.c.l.b16 %v918
        %v1047 = vunpack.c.l.b16 %v919
        %v1048 = vunpack.c.l.b16 %v920
        %v1049 = vunpack.c.l.b16 %v921
        %v1050 = vunpack.c.l.b16 %v922
        %v1051 = vunpack.c.l.b16 %v923
        %v1052 = vunpack.c.l.b16 %v924
        %v1053 = vunpack.c.l.b16 %v925
        %v1054 = vunpack.c.l.b16 %v926
        %v1055 = vunpack.c.l.b16 %v927
        %v1056 = vunpack.c.l.b16 %v928
        %v1057 = vunpack.c.l.b16 %v929
        %v1058 = vunpack.c.l.b16 %v930
        %v1059 = vunpack.c.l.b16 %v931
        %v1060 = vunpack.c.l.b16 %v932
        %v1061 = vunpack.c.l.b16 %v933
        %v1062 = vunpack.c.l.b16 %v934
        %v1063 = vunpack.c.l.b16 %v935
        %v1064 = vunpack.c.l.b16 %v936
        %v1065 = vunpack.c.l.b16 %v937
        %v1066 = vunpack.c.l.b16 %v938
        %v1067 = vunpack.c.l.b16 %v939
        %v1068 = vunpack.c.l.b16 %v940
        %v1069 = vunpack.c.l.b16 %v941
        %v1070 = vunpack.c.l.b16 %v942
        %v1071 = vunpack.c.l.b16 %v943
        %v1072 = vunpack.c.l.b16 %v944
        %v1073 = vunpack.c.l.b16 %v945
        %v1074 = vunpack.c.l.b16 %v946
        %v1075 = vunpack.c.l.b16 %v947
        %v1076 = vunpack.c.l.b16 %v948
        %v1077 = vunpack.c.l.b16 %v949
        %v1078 = vunpack.c.l.b16 %v950
        %v1079 = vunpack.c.l.b16 %v951
        %v1080 = vunpack.c.l.b16 %v952
        %v1081 = vunpack.c.l.b16 %v953
        %v1082 = vunpack.c.l.b16 %v954
        %v1083 = vunpack.c.l.b16 %v955
        %v1084 = vunpack.c.l.b16 %v956
        %v1085 = vunpack.c.l.b16 %v957
        %v1086 = vunpack.c.l.b16 %v958
        %v1087 = vunpack.c.l.b16 %v959
        %v1088 = vunpack.c.l.b16 %v960
        %v1089 = vunpack.c.l.b16 %v961
        %v1090 = vpack.c.b16 %v1027, %v1026
        %v1091 = vpack.c.b16 %v1029, %v1028
        %v1092 = vpack.c.b16 %v1031, %v1030
        %v1093 = vpack.c.b16 %v1033, %v1032
        %v1094 = vpack.c.b16 %v1035, %v1034
        %v1095 = vpack.c.b16 %v1037, %v1036
        %v1096 = vpack.c.b16 %v1039, %v1038
        %v1097 = vpack.c.b16 %v1041, %v1040
        %v1098 = vpack.c.b16 %v1043, %v1042
        %v1099 = vpack.c.b16 %v1045, %v1044
        %v1100 = vpack.c.b16 %v1047, %v1046
        %v1101 = vpack.c.b16 %v1049, %v1048
        %v1102 = vpack.c.b16 %v1051, %v1050
        %v1103 = vpack.c.b16 %v1053, %v1052
        %v1104 = vpack.c.b16 %v1055, %v1054
        %v1105 = vpack.c.b16 %v1057, %v1056
        %v1106 = vpack.c.b16 %v1059, %v1058
        %v1107 = vpack.c.b16 %v1061, %v1060
        %v1108 = vpack.c.b16 %v1063, %v1062
        %v1109 = vpack.c.b16 %v1065, %v1064
        %v1110 = vpack.c.b16 %v1067, %v1066
        %v1111 = vpack.c.b16 %v1069, %v1068
        %v1112 = vpack.c.b16 %v1071, %v1070
        %v1113 = vpack.c.b16 %v1073, %v1072
        %v1114 = vpack.c.b16 %v1075, %v1074
        %v1115 = vpack.c.b16 %v1077, %v1076
        %v1116 = vpack.c.b16 %v1079, %v1078
        %v1117 = vpack.c.b16 %v1081, %v1080
        %v1118 = vpack.c.b16 %v1083, %v1082
        %v1119 = vpack.c.b16 %v1085, %v1084
        %v1120 = vpack.c.b16 %v1087, %v1086
        %v1121 = vpack.c.b16 %v1089, %v1088
        %1154 = vmatprep.subr.bf16.mxu0 0
        %1155 = vmatpush1.bf16.msra.mxu0 %v1097
        %1156 = vmatprep.subr.bf16.mxu0 0
        %1157 = vmatpush1.bf16.msra.mxu0 %v1096
        %1158 = vmatprep.subr.bf16.mxu0 0
        %1159 = vmatpush1.bf16.msra.mxu0 %v1095
        %1160 = vmatprep.subr.bf16.mxu0 0
        %1161 = vmatpush1.bf16.msra.mxu0 %v1094
        %1162 = vmatprep.subr.bf16.mxu0 0
        %1163 = vmatpush1.bf16.msra.mxu0 %v1093
        %1164 = vmatprep.subr.bf16.mxu0 0
        %1165 = vmatpush1.bf16.msra.mxu0 %v1092
        %1166 = vmatprep.subr.bf16.mxu0 0
        %1167 = vmatpush1.bf16.msra.mxu0 %v1091
        %1168 = vmatprep.subr.bf16.mxu0 0
        %1169 = vmatpush1.bf16.msra.mxu0 %v1090
        %1170 = vmatprep.subr.bf16.mxu0 0
        %1171 = vmatpush2.bf16.msra.mxu0 %v1105
        %1172 = vmatprep.subr.bf16.mxu0 0
        %1173 = vmatpush2.bf16.msra.mxu0 %v1104
        %1174 = vmatprep.subr.bf16.mxu0 0
        %1175 = vmatpush2.bf16.msra.mxu0 %v1103
        %1176 = vmatprep.subr.bf16.mxu0 0
        %1177 = vmatpush2.bf16.msra.mxu0 %v1102
        %1178 = vmatprep.subr.bf16.mxu0 0
        %1179 = vmatpush2.bf16.msra.mxu0 %v1101
        %1180 = vmatprep.subr.bf16.mxu0 0
        %1181 = vmatpush2.bf16.msra.mxu0 %v1100
        %1182 = vmatprep.subr.bf16.mxu0 0
        %1183 = vmatpush2.bf16.msra.mxu0 %v1099
        %1184 = vmatprep.subr.bf16.mxu0 0
        %1185 = vmatpush2.bf16.msra.mxu0 %v1098
        %1186 = vmatprep.mubr.bf16.mxu0 %v867
        %1187 = vmatmul.mubr.bf16.gmra.mxu0 %v866
        %v1188 = vpop.f32.mrf.mxu0
        %v1189 = vadd.f32 0.0, %v1188
        %v1190 = vpop.f32.mrf.mxu0
        %v1191 = vpop.f32.mrf.mxu0
        %v1192 = vadd.f32 0.0, %v1191
        %v1193 = vpop.f32.mrf.mxu0
        %1194 = vmatprep.mubr.bf16.mxu0 %v871
        %1195 = vmatmul.mubr.bf16.gmra.mxu0 %v870
        %v1196 = vpop.f32.mrf.mxu0
        %v1197 = vadd.f32 0.0, %v1196
        %v1198 = vpop.f32.mrf.mxu0
        %v1199 = vpop.f32.mrf.mxu0
        %v1200 = vadd.f32 0.0, %v1199
        %v1201 = vpop.f32.mrf.mxu0
        %1202 = vmatprep.mubr.bf16.mxu0 %v875
        %1203 = vmatmul.mubr.bf16.gmra.mxu0 %v874
        %v1204 = vpop.f32.mrf.mxu0
        %v1205 = vadd.f32 0.0, %v1204
        %v1206 = vpop.f32.mrf.mxu0
        %v1207 = vpop.f32.mrf.mxu0
        %v1208 = vadd.f32 0.0, %v1207
        %v1209 = vpop.f32.mrf.mxu0
        %1210 = vmatprep.mubr.bf16.mxu0 %v879
        %1211 = vmatmul.mubr.bf16.gmra.mxu0 %v878
        %v1212 = vpop.f32.mrf.mxu0
        %v1213 = vadd.f32 0.0, %v1212
        %v1214 = vpop.f32.mrf.mxu0
        %v1215 = vpop.f32.mrf.mxu0
        %v1216 = vadd.f32 0.0, %v1215
        %v1217 = vpop.f32.mrf.mxu0
        %1218 = vmatprep.mubr.bf16.mxu0 %v883
        %1219 = vmatmul.mubr.bf16.gmra.mxu0 %v882
        %v1220 = vpop.f32.mrf.mxu0
        %v1221 = vadd.f32 0.0, %v1220
        %v1222 = vpop.f32.mrf.mxu0
        %v1223 = vpop.f32.mrf.mxu0
        %v1224 = vadd.f32 0.0, %v1223
        %v1225 = vpop.f32.mrf.mxu0
        %1226 = vmatprep.mubr.bf16.mxu0 %v887
        %1227 = vmatmul.mubr.bf16.gmra.mxu0 %v886
        %v1228 = vpop.f32.mrf.mxu0
        %v1229 = vadd.f32 0.0, %v1228
        %v1230 = vpop.f32.mrf.mxu0
        %v1231 = vpop.f32.mrf.mxu0
        %v1232 = vadd.f32 0.0, %v1231
        %v1233 = vpop.f32.mrf.mxu0
        %1234 = vmatprep.mubr.bf16.mxu0 %v891
        %1235 = vmatmul.mubr.bf16.gmra.mxu0 %v890
        %v1236 = vpop.f32.mrf.mxu0
        %v1237 = vadd.f32 0.0, %v1236
        %v1238 = vpop.f32.mrf.mxu0
        %v1239 = vpop.f32.mrf.mxu0
        %v1240 = vadd.f32 0.0, %v1239
        %v1241 = vpop.f32.mrf.mxu0
        %1242 = vmatprep.mubr.bf16.mxu0 %v895
        %1243 = vmatmul.mubr.bf16.gmra.mxu0 %v894
        %v1244 = vpop.f32.mrf.mxu0
        %v1245 = vadd.f32 0.0, %v1244
        %v1246 = vpop.f32.mrf.mxu0
        %v1247 = vpop.f32.mrf.mxu0
        %v1248 = vadd.f32 0.0, %v1247
        %v1249 = vpop.f32.mrf.mxu0
        %1250 = vdwg.mxu0
        %1251 = vmatprep.subr.bf16.mxu0 0
        %1252 = vmatpush1.bf16.msra.mxu0 %v1113
        %1253 = vmatprep.subr.bf16.mxu0 0
        %1254 = vmatpush1.bf16.msra.mxu0 %v1112
        %1255 = vmatprep.subr.bf16.mxu0 0
        %1256 = vmatpush1.bf16.msra.mxu0 %v1111
        %1257 = vmatprep.subr.bf16.mxu0 0
        %1258 = vmatpush1.bf16.msra.mxu0 %v1110
        %1259 = vmatprep.subr.bf16.mxu0 0
        %1260 = vmatpush1.bf16.msra.mxu0 %v1109
        %1261 = vmatprep.subr.bf16.mxu0 0
        %1262 = vmatpush1.bf16.msra.mxu0 %v1108
        %1263 = vmatprep.subr.bf16.mxu0 0
        %1264 = vmatpush1.bf16.msra.mxu0 %v1107
        %1265 = vmatprep.subr.bf16.mxu0 0
        %1266 = vmatpush1.bf16.msra.mxu0 %v1106
        %1267 = vmatprep.subr.bf16.mxu0 0
        %1268 = vmatpush2.bf16.msra.mxu0 %v1121
        %1269 = vmatprep.subr.bf16.mxu0 0
        %1270 = vmatpush2.bf16.msra.mxu0 %v1120
        %1271 = vmatprep.subr.bf16.mxu0 0
        %1272 = vmatpush2.bf16.msra.mxu0 %v1119
        %1273 = vmatprep.subr.bf16.mxu0 0
        %1274 = vmatpush2.bf16.msra.mxu0 %v1118
        %1275 = vmatprep.subr.bf16.mxu0 0
        %1276 = vmatpush2.bf16.msra.mxu0 %v1117
        %1277 = vmatprep.subr.bf16.mxu0 0
        %1278 = vmatpush2.bf16.msra.mxu0 %v1116
        %1279 = vmatprep.subr.bf16.mxu0 0
        %1280 = vmatpush2.bf16.msra.mxu0 %v1115
        %1281 = vmatprep.subr.bf16.mxu0 0
        %1282 = vmatpush2.bf16.msra.mxu0 %v1114
        %1283 = vmatprep.mubr.bf16.mxu0 %v869
        %1284 = vmatmul.mubr.bf16.gmra.mxu0 %v868
        %v1285 = vpop.f32.mrf.mxu0
        %v1286 = vadd.f32 %v1189, %v1285
        %v1287 = vpop.f32.mrf.mxu0
        %v1288 = vpop.f32.mrf.mxu0
        %v1289 = vadd.f32 %v1192, %v1288
        %v1290 = vpop.f32.mrf.mxu0
        %1291 = vmatprep.mubr.bf16.mxu0 %v873
        %1292 = vmatmul.mubr.bf16.gmra.mxu0 %v872
        %v1293 = vpop.f32.mrf.mxu0
        %v1294 = vadd.f32 %v1197, %v1293
        %v1295 = vpop.f32.mrf.mxu0
        %v1296 = vpop.f32.mrf.mxu0
        %v1297 = vadd.f32 %v1200, %v1296
        %v1298 = vpop.f32.mrf.mxu0
        %1299 = vmatprep.mubr.bf16.mxu0 %v877
        %1300 = vmatmul.mubr.bf16.gmra.mxu0 %v876
        %v1301 = vpop.f32.mrf.mxu0
        %v1302 = vadd.f32 %v1205, %v1301
        %v1303 = vpop.f32.mrf.mxu0
        %v1304 = vpop.f32.mrf.mxu0
        %v1305 = vadd.f32 %v1208, %v1304
        %v1306 = vpop.f32.mrf.mxu0
        %1307 = vmatprep.mubr.bf16.mxu0 %v881
        %1308 = vmatmul.mubr.bf16.gmra.mxu0 %v880
        %v1309 = vpop.f32.mrf.mxu0
        %v1310 = vadd.f32 %v1213, %v1309
        %v1311 = vpop.f32.mrf.mxu0
        %v1312 = vpop.f32.mrf.mxu0
        %v1313 = vadd.f32 %v1216, %v1312
        %v1314 = vpop.f32.mrf.mxu0
        %1315 = vmatprep.mubr.bf16.mxu0 %v885
        %1316 = vmatmul.mubr.bf16.gmra.mxu0 %v884
        %v1317 = vpop.f32.mrf.mxu0
        %v1318 = vadd.f32 %v1221, %v1317
        %v1319 = vpop.f32.mrf.mxu0
        %v1320 = vpop.f32.mrf.mxu0
        %v1321 = vadd.f32 %v1224, %v1320
        %v1322 = vpop.f32.mrf.mxu0
        %1323 = vmatprep.mubr.bf16.mxu0 %v889
        %1324 = vmatmul.mubr.bf16.gmra.mxu0 %v888
        %v1325 = vpop.f32.mrf.mxu0
        %v1326 = vadd.f32 %v1229, %v1325
        %v1327 = vpop.f32.mrf.mxu0
        %v1328 = vpop.f32.mrf.mxu0
        %v1329 = vadd.f32 %v1232, %v1328
        %v1330 = vpop.f32.mrf.mxu0
        %1331 = vmatprep.mubr.bf16.mxu0 %v893
        %1332 = vmatmul.mubr.bf16.gmra.mxu0 %v892
        %v1333 = vpop.f32.mrf.mxu0
        %v1334 = vadd.f32 %v1237, %v1333
        %v1335 = vpop.f32.mrf.mxu0
        %v1336 = vpop.f32.mrf.mxu0
        %v1337 = vadd.f32 %v1240, %v1336
        %v1338 = vpop.f32.mrf.mxu0
        %1339 = vmatprep.mubr.bf16.mxu0 %v897
        %1340 = vmatmul.mubr.bf16.gmra.mxu0 %v896
        %v1341 = vpop.f32.mrf.mxu0
        %v1342 = vadd.f32 %v1245, %v1341
        %v1343 = vpop.f32.mrf.mxu0
        %v1344 = vpop.f32.mrf.mxu0
        %v1345 = vadd.f32 %v1248, %v1344
        %v1346 = vpop.f32.mrf.mxu0
        %1347 = vdwg.mxu0
        %v1348 = vadd.f32 %v850, %v1286
        %v1349 = vadd.f32 %v851, %v1289
        %v1350 = vadd.f32 %v852, %v1294
        %v1351 = vadd.f32 %v853, %v1297
        %v1352 = vadd.f32 %v854, %v1302
        %v1353 = vadd.f32 %v855, %v1305
        %v1354 = vadd.f32 %v856, %v1310
        %v1355 = vadd.f32 %v857, %v1313
        %v1356 = vadd.f32 %v858, %v1318
        %v1357 = vadd.f32 %v859, %v1321
        %v1358 = vadd.f32 %v860, %v1326
        %v1359 = vadd.f32 %v861, %v1329
        %v1360 = vadd.f32 %v862, %v1334
        %v1361 = vadd.f32 %v863, %v1337
        %v1362 = vadd.f32 %v864, %v1342
        %v1363 = vadd.f32 %v865, %v1345
        %1364 = vst [vmem:[#allocation2] sm:$0xff] %v1348
        %1365 = vst [vmem:[#allocation2 + $0x8] sm:$0xff] %v1349
        %1366 = vst [vmem:[#allocation2 + $0x10] sm:$0xff] %v1350
        %1367 = vst [vmem:[#allocation2 + $0x18] sm:$0xff] %v1351
        %1368 = vst [vmem:[#allocation2 + $0x20] sm:$0xff] %v1352
        %1369 = vst [vmem:[#allocation2 + $0x28] sm:$0xff] %v1353
        %1370 = vst [vmem:[#allocation2 + $0x30] sm:$0xff] %v1354
        %1371 = vst [vmem:[#allocation2 + $0x38] sm:$0xff] %v1355
        %1372 = vst [vmem:[#allocation2 + $0x40] sm:$0xff] %v1356
        %1373 = vst [vmem:[#allocation2 + $0x48] sm:$0xff] %v1357
        %1374 = vst [vmem:[#allocation2 + $0x50] sm:$0xff] %v1358
        %1375 = vst [vmem:[#allocation2 + $0x58] sm:$0xff] %v1359
        %1376 = vst [vmem:[#allocation2 + $0x60] sm:$0xff] %v1360
        %1377 = vst [vmem:[#allocation2 + $0x68] sm:$0xff] %v1361
        %1378 = vst [vmem:[#allocation2 + $0x70] sm:$0xff] %v1362
        %1379 = vst [vmem:[#allocation2 + $0x78] sm:$0xff] %v1363
        // Predicated region
        $region45: #{feed_forward_forward.1} parent=39 // pred_check
          %p1380 = pneg %p302
        $region46: #{feed_forward_forward.1} parent=39 // pred_check_branch
          %1382 = sbr.rel (%p1380) target = $region48
        $region47: #{feed_forward_forward.1} parent=39 // pred_region
          %v1383 = vld [vmem:[#allocation2] sm:$0xff]
          %v1384 = vld [vmem:[#allocation2 + $0x8] sm:$0xff]
          %v1385 = vld [vmem:[#allocation2 + $0x10] sm:$0xff]
          %v1386 = vld [vmem:[#allocation2 + $0x18] sm:$0xff]
          %v1387 = vld [vmem:[#allocation2 + $0x20] sm:$0xff]
          %v1388 = vld [vmem:[#allocation2 + $0x28] sm:$0xff]
          %v1389 = vld [vmem:[#allocation2 + $0x30] sm:$0xff]
          %v1390 = vld [vmem:[#allocation2 + $0x38] sm:$0xff]
          %v1391 = vld [vmem:[#allocation2 + $0x40] sm:$0xff]
          %v1392 = vld [vmem:[#allocation2 + $0x48] sm:$0xff]
          %v1393 = vld [vmem:[#allocation2 + $0x50] sm:$0xff]
          %v1394 = vld [vmem:[#allocation2 + $0x58] sm:$0xff]
          %v1395 = vld [vmem:[#allocation2 + $0x60] sm:$0xff]
          %v1396 = vld [vmem:[#allocation2 + $0x68] sm:$0xff]
          %v1397 = vld [vmem:[#allocation2 + $0x70] sm:$0xff]
          %v1398 = vld [vmem:[#allocation2 + $0x78] sm:$0xff]
          %v1399 = vld [vmem:[%s4] sm:$0x1]
          %v1401 = vlaneseq
          %v1402 = vshrl.u32 %v1401, 7
          %v1403 = vsub.s32 0, %v1402
          %v1404 = vrot.slane %v1399, %v1403
          %v1406 = vadd.f32 %v1383, %v1404
          %v1407 = vadd.f32 %v1384, %v1404
          %v1408 = vadd.f32 %v1385, %v1404
          %v1409 = vadd.f32 %v1386, %v1404
          %v1410 = vadd.f32 %v1387, %v1404
          %v1411 = vadd.f32 %v1388, %v1404
          %v1412 = vadd.f32 %v1389, %v1404
          %v1413 = vadd.f32 %v1390, %v1404
          %v1414 = vadd.f32 %v1391, %v1404
          %v1415 = vadd.f32 %v1392, %v1404
          %v1416 = vadd.f32 %v1393, %v1404
          %v1417 = vadd.f32 %v1394, %v1404
          %v1418 = vadd.f32 %v1395, %v1404
          %v1419 = vadd.f32 %v1396, %v1404
          %v1420 = vadd.f32 %v1397, %v1404
          %v1421 = vadd.f32 %v1398, %v1404
          %1422 = vst [vmem:[%s276] sm:$0xff] %v1406
          %1423 = vst [vmem:[%s276 + $0x8] sm:$0xff] %v1407
          %1424 = vst [vmem:[%s276 + $0x10] sm:$0xff] %v1408
          %1425 = vst [vmem:[%s276 + $0x18] sm:$0xff] %v1409
          %1426 = vst [vmem:[%s276 + $0x20] sm:$0xff] %v1410
          %1427 = vst [vmem:[%s276 + $0x28] sm:$0xff] %v1411
          %1428 = vst [vmem:[%s276 + $0x30] sm:$0xff] %v1412
          %1429 = vst [vmem:[%s276 + $0x38] sm:$0xff] %v1413
          %1430 = vst [vmem:[%s276 + $0x40] sm:$0xff] %v1414
          %1431 = vst [vmem:[%s276 + $0x48] sm:$0xff] %v1415
          %1432 = vst [vmem:[%s276 + $0x50] sm:$0xff] %v1416
          %1433 = vst [vmem:[%s276 + $0x58] sm:$0xff] %v1417
          %1434 = vst [vmem:[%s276 + $0x60] sm:$0xff] %v1418
          %1435 = vst [vmem:[%s276 + $0x68] sm:$0xff] %v1419
          %1436 = vst [vmem:[%s276 + $0x70] sm:$0xff] %v1420
          %1437 = vst [vmem:[%s276 + $0x78] sm:$0xff] %v1421
        $region48: #{feed_forward_forward.1} parent=39 // pred_fallthru
          _
        %s1438 = sand.u32 %s164, 1
        %s1439 = scalar_lea.sflag [#allocation4], %s1438
        %s1440 = sand.u32 %s164, 1
        %s1441 = smul.addr %s1440, 128
        %s1442 = scalar_lea.vmem [#allocation3], %s1441
        // Predicated region
        $region49: #{feed_forward_forward.1} parent=39 // pred_check
          %p1443 = pneg %p174
        $region50: #{feed_forward_forward.1} parent=39 // pred_check_branch
          %1445 = sbr.rel (%p1443) target = $region52
        $region51: #{feed_forward_forward.1} parent=39 // pred_region
          %s1446 = smul.u32 16, %s23
          %s1448 = ssub.s32 2048, 2048
          %1449 = vsyncadd %s1439, %s1448
          %s1450 = smul.addr %s1446, 128
          %s1451 = scalar_lea.hbm %s5, %s1450
          %s1452 = sshll.u32 %s1442, 4
          %s1453 = int_to_ptr.vmem [resolvable:$true] %s1452
          %1458 = dma.vmem_to_hbm [thread:$0]  %s1453, 2048, %s1451, %s1439, 128, 128, 8
        $region52: #{feed_forward_forward.1} parent=39 // pred_fallthru
          _
      $region40: #{feed_forward_forward.1} parent=5 // pred_fallthru
        _
      %p1459 = scmp.le.s32.totalorder 2, %s14
      // Predicated region
      $region53: #{feed_forward_forward.1} parent=5 // pred_check
        %p1460 = pneg %p1459
      $region54: #{feed_forward_forward.1} parent=5 // pred_check_branch
        %1462 = sbr.rel (%p1460) target = $region56
      $region55: #{feed_forward_forward.1} parent=5 // pred_region
        %s1463 = ssub.s32 %s14, 2
        // Predicated region
        $region57: #{feed_forward_forward.1} parent=55 // pred_check
          %p1464 = pneg %p180
        $region58: #{feed_forward_forward.1} parent=55 // pred_check_branch
          %1466 = sbr.rel (%p1464) target = $region60
        $region59: #{feed_forward_forward.1} parent=55 // pred_region
          %s1467 = sand.u32 %s165, 1
          %s1468 = scalar_lea.sflag [#allocation4], %s1467
          %s1469 = sand.u32 %s165, 1
          %s1470 = smul.addr %s1469, 128
          %s1471 = scalar_lea.vmem [#allocation3], %s1470
          %1472 = dma.done %s1468, 2048
        $region60: #{feed_forward_forward.1} parent=55 // pred_fallthru
          _
      $region56: #{feed_forward_forward.1} parent=5 // pred_fallthru
        _
    $region6: #{feed_forward_forward.1} parent=1 // loop_footer
      %s18 = sadd.s32 1, %s14
    $region7: #{feed_forward_forward.1} parent=1 // loop_footer_branch
      %13 = sbr.rel target = $region3
    $region8: #{feed_forward_forward.1} parent=1 // loop_exit
      _
    %1473 = vsyncpa [#allocation4], 1
    %s1474 = scalar_lea.sflag [#allocation4], 1
    %1475 = vsyncpa %s1474, 1

</llo_original>
